<compile_context>
chip_gen: v7x
topology: tpu7x:2x2x1
jax: 0.10.0
libtpu: 0.0.40
codegen_flags: <defaults>
</compile_context>

<pallas_src>
import functools
import math

import jax
import jax.numpy as jnp
from jax.experimental import pallas as pl
from jax.experimental.pallas import tpu as pltpu


_INV_SQRT2 = 1.0 / math.sqrt(2.0)

NUM_HEADS = 12
HIDDEN = 768
MLP_DIM = 3072


def _pick_tile(dim, candidates):
    for c in candidates:
        if c <= dim and dim % c == 0:
            return c
    return dim  # full extent (always a legal block)


# ----------------------------------------------------------------------------
# Tiled matmul with fused bias / GELU / residual epilogue
# ----------------------------------------------------------------------------
def _make_matmul_kernel(activation, has_residual):
    def kernel(*refs):
        if has_residual:
            a_ref, w_ref, b_ref, r_ref, o_ref, acc_ref = refs
        else:
            a_ref, w_ref, b_ref, o_ref, acc_ref = refs
            r_ref = None
        k = pl.program_id(2)

        @pl.when(k == 0)
        def _():
            acc_ref[...] = jnp.zeros_like(acc_ref)

        acc_ref[...] += jnp.dot(
            a_ref[...], w_ref[...], preferred_element_type=jnp.float32
        )

        @pl.when(k == pl.num_programs(2) - 1)
        def _():
            y = acc_ref[...] + b_ref[...]
            if activation == "gelu":
                # exact (erf-based) GELU, matching torch.nn.functional.gelu
                y = 0.5 * y * (1.0 + jax.lax.erf(y * _INV_SQRT2))
            if has_residual:
                y = y + r_ref[...]
            o_ref[...] = y.astype(o_ref.dtype)

    return kernel


@functools.partial(jax.jit, static_argnames=("activation", "out_dtype"))
def pallas_linear(a, w, bias, residual=None, *, activation=None,
                  out_dtype=jnp.float32):
    """y = act(a @ w + bias) [+ residual].  a:(M,K) w:(K,N) bias:(N,) -> (M,N)."""
    M, K = a.shape
    K2, N = w.shape
    assert K2 == K
    tm = _pick_tile(M, (256, 128, 64, 32, 16, 8))
    tn = _pick_tile(N, (512, 384, 256, 128))
    tk = _pick_tile(K, (512, 384, 256, 128))

    a16 = a.astype(jnp.bfloat16)
    w16 = w.astype(jnp.bfloat16)
    bias2 = bias.reshape(1, N).astype(jnp.float32)

    has_res = residual is not None
    kernel = _make_matmul_kernel(activation, has_res)

    in_specs = [
        pl.BlockSpec((tm, tk), lambda i, j, k: (i, k)),
        pl.BlockSpec((tk, tn), lambda i, j, k: (k, j)),
        pl.BlockSpec((1, tn), lambda i, j, k: (0, j)),
    ]
    inputs = [a16, w16, bias2]
    if has_res:
        in_specs.append(pl.BlockSpec((tm, tn), lambda i, j, k: (i, j)))
        inputs.append(residual)

    return pl.pallas_call(
        kernel,
        grid=(M // tm, N // tn, K // tk),
        in_specs=in_specs,
        out_specs=pl.BlockSpec((tm, tn), lambda i, j, k: (i, j)),
        out_shape=jax.ShapeDtypeStruct((M, N), out_dtype),
        scratch_shapes=[pltpu.VMEM((tm, tn), jnp.float32)],
        compiler_params=pltpu.CompilerParams(
            dimension_semantics=("parallel", "parallel", "arbitrary")
        ),
    )(*inputs)


# ----------------------------------------------------------------------------
# LayerNorm (row-tiled, two-pass variance, fused affine)
# ----------------------------------------------------------------------------
def _make_ln_kernel(eps):
    def kernel(x_ref, g_ref, b_ref, o_ref):
        x = x_ref[...]
        mean = jnp.mean(x, axis=-1, keepdims=True)
        xc = x - mean
        var = jnp.mean(xc * xc, axis=-1, keepdims=True)
        inv = jax.lax.rsqrt(var + eps)
        o_ref[...] = (xc * inv) * g_ref[...] + b_ref[...]

    return kernel


@functools.partial(jax.jit, static_argnames=("eps",))
def pallas_layernorm(x, gamma, beta, *, eps=1e-6):
    """x:(M,N) f32 -> LayerNorm over last dim."""
    M, N = x.shape
    tm = _pick_tile(M, (512, 256, 128, 64, 32, 16, 8))
    return pl.pallas_call(
        _make_ln_kernel(float(eps)),
        grid=(M // tm,),
        in_specs=[
            pl.BlockSpec((tm, N), lambda i: (i, 0)),
            pl.BlockSpec((1, N), lambda i: (0, 0)),
            pl.BlockSpec((1, N), lambda i: (0, 0)),
        ],
        out_specs=pl.BlockSpec((tm, N), lambda i: (i, 0)),
        out_shape=jax.ShapeDtypeStruct((M, N), jnp.float32),
        compiler_params=pltpu.CompilerParams(dimension_semantics=("parallel",)),
    )(x, gamma.reshape(1, N), beta.reshape(1, N))


# ----------------------------------------------------------------------------
# Multi-head self-attention core (two heads per grid step -> 128-lane blocks)
# ----------------------------------------------------------------------------
def _make_attention_kernel(head_dim, scale):
    def kernel(q_ref, k_ref, v_ref, ctx_ref, probs_ref):
        qp = q_ref[0]  # (S, 2*head_dim) bf16
        kp = k_ref[0]
        vp = v_ref[0]
        outs = []
        for hh in range(2):  # two heads per block, static unroll
            lo, hi = hh * head_dim, (hh + 1) * head_dim
            q = qp[:, lo:hi]
            k = kp[:, lo:hi]
            v = vp[:, lo:hi]
            # scores = q @ k^T  (NT matmul, no explicit transpose), f32 accum
            s = jax.lax.dot_general(
                q, k, (((1,), (1,)), ((), ())),
                preferred_element_type=jnp.float32,
            ) * scale
            m = jnp.max(s, axis=-1, keepdims=True)
            e = jnp.exp(s - m)
            p = e / jnp.sum(e, axis=-1, keepdims=True)          # f32 softmax
            probs_ref[0, hh] = p
            outs.append(
                jnp.dot(p.astype(v.dtype), v, preferred_element_type=jnp.float32)
            )
        ctx_ref[0] = jnp.concatenate(outs, axis=-1).astype(ctx_ref.dtype)

    return kernel


@functools.partial(jax.jit, static_argnames=("num_heads",))
def pallas_attention(qkv, *, num_heads):
    """qkv: (B, S, 3*D) fused projections (bf16) -> (context (B,S,D) f32, probs (B,H,S,S) f32)."""
    B, S, threeD = qkv.shape
    D = threeD // 3
    head_dim = D // num_heads
    assert num_heads % 2 == 0 and D % num_heads == 0
    HP = num_heads // 2  # head-pairs; each block is lane-dense (S, 2*head_dim)
    scale = 1.0 / math.sqrt(head_dim)
    kernel = _make_attention_kernel(head_dim, scale)
    blk = 2 * head_dim

    ctx, probs = pl.pallas_call(
        kernel,
        grid=(B, HP),
        in_specs=[
            pl.BlockSpec((1, S, blk), lambda b, h: (b, 0, h)),            # q pair
            pl.BlockSpec((1, S, blk), lambda b, h: (b, 0, HP + h)),       # k pair
            pl.BlockSpec((1, S, blk), lambda b, h: (b, 0, 2 * HP + h)),   # v pair
        ],
        out_specs=[
            pl.BlockSpec((1, S, blk), lambda b, h: (b, 0, h)),            # context
            pl.BlockSpec((1, 2, S, S), lambda b, h: (b, h, 0, 0)),        # probs
        ],
        out_shape=(
            jax.ShapeDtypeStruct((B, S, D), jnp.float32),
            jax.ShapeDtypeStruct((B, num_heads, S, S), jnp.float32),
        ),
        compiler_params=pltpu.CompilerParams(
            dimension_semantics=("parallel", "parallel")
        ),
    )(qkv, qkv, qkv)
    return ctx, probs


# ----------------------------------------------------------------------------
# Block / Encoder forward (plain-JAX glue around the Pallas kernels)
# ----------------------------------------------------------------------------
@jax.jit
def block_forward(x, p):
    """One transformer Block. x: (B, S, D) f32. Returns (x_out, attn_probs)."""
    B, S, D = x.shape
    x2 = x.reshape(B * S, D)

    # h = x ; x = attention_norm(x)
    a = pallas_layernorm(x2, p["ln1_g"], p["ln1_b"], eps=1e-6)

    # fused Q/K/V projection (bf16 output to halve qkv HBM traffic)
    qkv = pallas_linear(a, p["w_qkv"], p["b_qkv"],
                        out_dtype=jnp.bfloat16).reshape(B, S, 3 * D)

    # scaled dot-product attention (probs materialized: Attention(vis=True))
    ctx, probs = pallas_attention(qkv, num_heads=NUM_HEADS)

    # output projection, residual add fused in epilogue:  x = out(ctx) + h
    x_attn = pallas_linear(ctx.reshape(B * S, D), p["w_o"], p["b_o"], residual=x2)

    # h = x ; x = ffn_norm(x)
    b = pallas_layernorm(x_attn, p["ln2_g"], p["ln2_b"], eps=1e-6)

    # MLP: fc1 + exact GELU fused; fc2 + residual fused.
    # TODO(synk): Dropout(0.1) -> eval-mode identity (no RNG).
    h1 = pallas_linear(b, p["w_fc1"], p["b_fc1"], activation="gelu")
    out = pallas_linear(h1, p["w_fc2"], p["b_fc2"], residual=x_attn)

    return out.reshape(B, S, D), probs


def encoder_forward(hidden_states, params, vis=True):
    """Matches Encoder.forward: returns (encoded, attn_weights)."""
    attn_weights = []
    x = hidden_states
    for p in params["layers"]:
        x, w = block_forward(x, p)   # compiled once, reused for all layers
        if vis:
            attn_weights.append(w)
    B, S, D = x.shape
    encoded = pallas_layernorm(
        x.reshape(B * S, D), params["enc_g"], params["enc_b"], eps=1e-6
    ).reshape(B, S, D)
    return encoded, attn_weights


# ----------------------------------------------------------------------------
# Deterministic parameter initialization (mirrors module __init__ shapes)
# ----------------------------------------------------------------------------
def init_params(key, *, num_layers, hidden=HIDDEN, mlp_dim=MLP_DIM):
    def linear(k, fan_in, fan_out):
        kw, kb = jax.random.split(k)
        w = jax.random.normal(kw, (fan_in, fan_out), jnp.float32) * 0.02
        b = jax.random.normal(kb, (fan_out,), jnp.float32) * 1e-6
        return w, b

    keys = jax.random.split(key, num_layers)
    layers = []
    for li in range(num_layers):
        ks = jax.random.split(keys[li], 6)
        wq, bq = linear(ks[0], hidden, hidden)
        wk, bk = linear(ks[1], hidden, hidden)
        wv, bv = linear(ks[2], hidden, hidden)
        wo, bo = linear(ks[3], hidden, hidden)
        w1, b1 = linear(ks[4], hidden, mlp_dim)
        w2, b2 = linear(ks[5], mlp_dim, hidden)
        layers.append({
            "ln1_g": jnp.ones((hidden,), jnp.float32),
            "ln1_b": jnp.zeros((hidden,), jnp.float32),
            "w_qkv": jnp.concatenate([wq, wk, wv], axis=1),   # (D, 3D)
            "b_qkv": jnp.concatenate([bq, bk, bv], axis=0),   # (3D,)
            "w_o": wo, "b_o": bo,
            "ln2_g": jnp.ones((hidden,), jnp.float32),
            "ln2_b": jnp.zeros((hidden,), jnp.float32),
            "w_fc1": w1, "b_fc1": b1,
            "w_fc2": w2, "b_fc2": b2,
        })
    return {
        "layers": layers,
        "enc_g": jnp.ones((hidden,), jnp.float32),
        "enc_b": jnp.zeros((hidden,), jnp.float32),
    }


if __name__ == "__main__":
    batch, seq = 2, 16          # small demo shapes
    num_layers = 12             # Encoder default
    k_params, k_x = jax.random.split(jax.random.PRNGKey(0))
    params = init_params(k_params, num_layers=num_layers)
    x = jax.random.normal(k_x, (batch, seq, HIDDEN), jnp.float32)

    encoded, attn_weights = encoder_forward(x, params, vis=True)
    encoded = jax.block_until_ready(encoded)
    attn_weights = [jax.block_until_ready(w) for w in attn_weights]

    assert encoded.shape == (batch, seq, HIDDEN), encoded.shape
    assert len(attn_weights) == num_layers
    assert attn_weights[0].shape == (batch, NUM_HEADS, seq, seq)
    assert bool(jnp.all(jnp.isfinite(encoded)))
    # softmax rows must sum to 1
    row_sums = jnp.sum(attn_weights[0], axis=-1)
    assert bool(jnp.allclose(row_sums, 1.0, atol=1e-3)), row_sums
    print("KERNEL_OK")
</pallas_src>

<mosaic_0001>
module attributes {stable_mosaic.version = 11 : i64} {
  func.func @kernel(%arg0: i32, %arg1: memref<32x768xf32, #tpu.memory_space<vmem>>, %arg2: memref<1x768xf32, #tpu.memory_space<vmem>>, %arg3: memref<1x768xf32, #tpu.memory_space<vmem>>, %arg4: memref<32x768xf32, #tpu.memory_space<vmem>>) attributes {dimension_semantics = [#tpu.dimension_semantics<parallel>], iteration_bounds = array<i64: 1>, scalar_prefetch = 0 : i64, scratch_operands = 0 : i64, tpu.core_type = #tpu.core_type<tc>, window_params = [{transform_indices = @transform_0, window_bounds = array<i64: 32, 768>}, {pipeline_mode = #tpu.pipeline_mode<synchronous>, transform_indices = @transform_1, window_bounds = array<i64: 1, 768>}, {pipeline_mode = #tpu.pipeline_mode<synchronous>, transform_indices = @transform_2, window_bounds = array<i64: 1, 768>}, {transform_indices = @transform_3, window_bounds = array<i64: 32, 768>}]} {
    %c0 = arith.constant 0 : index
    %c0_0 = arith.constant 0 : index
    %0 = vector.load %arg1[%c0, %c0_0] : memref<32x768xf32, #tpu.memory_space<vmem>>, vector<32x768xf32>
    %cst = arith.constant dense<0.000000e+00> : vector<32xf32>
    %1 = vector.multi_reduction <add>, %0, %cst [1] : vector<32x768xf32> to vector<32xf32>
    %2 = vector.shape_cast %1 : vector<32xf32> to vector<32x1xf32>
    %cst_1 = arith.constant 7.680000e+02 : f32
    %3 = vector.broadcast %cst_1 : f32 to vector<32x1xf32>
    %4 = arith.divf %2, %3 : vector<32x1xf32>
    %5 = vector.broadcast %4 : vector<32x1xf32> to vector<32x768xf32>
    %6 = arith.subf %0, %5 : vector<32x768xf32>
    %7 = arith.mulf %6, %6 : vector<32x768xf32>
    %cst_2 = arith.constant dense<0.000000e+00> : vector<32xf32>
    %8 = vector.multi_reduction <add>, %7, %cst_2 [1] : vector<32x768xf32> to vector<32xf32>
    %9 = vector.shape_cast %8 : vector<32xf32> to vector<32x1xf32>
    %cst_3 = arith.constant 7.680000e+02 : f32
    %10 = vector.broadcast %cst_3 : f32 to vector<32x1xf32>
    %11 = arith.divf %9, %10 : vector<32x1xf32>
    %cst_4 = arith.constant 9.99999997E-7 : f32
    %12 = vector.broadcast %cst_4 : f32 to vector<32x1xf32>
    %13 = arith.addf %11, %12 : vector<32x1xf32>
    %14 = math.rsqrt %13 : vector<32x1xf32>
    %15 = vector.broadcast %14 : vector<32x1xf32> to vector<32x768xf32>
    %16 = arith.mulf %6, %15 : vector<32x768xf32>
    %c0_5 = arith.constant 0 : index
    %c0_6 = arith.constant 0 : index
    %17 = vector.load %arg2[%c0_5, %c0_6] : memref<1x768xf32, #tpu.memory_space<vmem>>, vector<1x768xf32>
    %18 = vector.broadcast %17 : vector<1x768xf32> to vector<32x768xf32>
    %19 = arith.mulf %16, %18 : vector<32x768xf32>
    %c0_7 = arith.constant 0 : index
    %c0_8 = arith.constant 0 : index
    %20 = vector.load %arg3[%c0_7, %c0_8] : memref<1x768xf32, #tpu.memory_space<vmem>>, vector<1x768xf32>
    %21 = vector.broadcast %20 : vector<1x768xf32> to vector<32x768xf32>
    %22 = arith.addf %19, %21 : vector<32x768xf32>
    %c0_9 = arith.constant 0 : index
    %c0_10 = arith.constant 0 : index
    %23 = vector.load %arg4[%c0_9, %c0_10] : memref<32x768xf32, #tpu.memory_space<vmem>>, vector<32x768xf32>
    tpu.vector_store %arg4[%c0_9, %c0_10], %22 {strides = array<i32>} : memref<32x768xf32, #tpu.memory_space<vmem>>, vector<32x768xf32>,
    return
  }
  func.func @transform_0(%arg0: i32) -> (i32, i32) {
    %c0_i32 = arith.constant 0 : i32
    %c0_i32_0 = arith.constant 0 : i32
    return %arg0, %c0_i32 : i32, i32
  }
  func.func @transform_1(%arg0: i32) -> (i32, i32) {
    %c0_i32 = arith.constant 0 : i32
    %c0_i32_0 = arith.constant 0 : i32
    %c0_i32_1 = arith.constant 0 : i32
    return %c0_i32, %c0_i32_0 : i32, i32
  }
  func.func @transform_2(%arg0: i32) -> (i32, i32) {
    %c0_i32 = arith.constant 0 : i32
    %c0_i32_0 = arith.constant 0 : i32
    %c0_i32_1 = arith.constant 0 : i32
    return %c0_i32, %c0_i32_0 : i32, i32
  }
  func.func @transform_3(%arg0: i32) -> (i32, i32) {
    %c0_i32 = arith.constant 0 : i32
    %c0_i32_0 = arith.constant 0 : i32
    return %arg0, %c0_i32 : i32, i32
  }
}

</mosaic_0001>

<llo_original>
// kernel: pallas_layernorm.1
$region0: #{pallas_layernorm.1}
  #allocation0 [shape = 'u32[]', space=smem, size = 0x4, offset = 0x4, fixed_abs, tag = 'smem constant byte address 0x4 - core index']
  #allocation1 [shape = 'u32[144,128]{1,0:T(1,128)}', space=vmem, size = 0x12000, scoped, tag = 'internal scratch']
  %s0 = inlined_call_operand.hbm [shape: f32[32,768], index: 0, kind: input, shape index: {}]
  %s1 = inlined_call_operand.vmem [shape: f32[1,768], index: 1, kind: input, shape index: {}]
  %s2 = inlined_call_operand.vmem [shape: f32[1,768], index: 2, kind: input, shape index: {}]
  %s3 = inlined_call_operand.hbm [shape: f32[32,768], index: 3, kind: output, shape index: {}]
  %s4 = sld [smem:[#allocation0]]
  $region26: #{pallas_layernorm.1} parent=0
    _
  %s6 = ssub.s32 1, %s4
  %s7 = scalar_select 0, %s6, %s4
  $region1: #{pallas_layernorm.1} parent=0
    #allocation2 [shape = 'u8[98304]{0}', space=vmem, size = 0x18000, scoped, tag = 'input window, operand 0, single buffered']
    #allocation3 [shape = 's32[1]{0}', space=sflag, size = 0x4, scoped, tag = 'scoped memory for pallas_layernorm.1']
    #allocation4 [shape = 's32[1]{0}', space=sflag, size = 0x4, scoped, tag = 'scoped memory for pallas_layernorm.1']
    #allocation5 [shape = 'u8[98304]{0}', space=vmem, size = 0x18000, scoped, tag = 'output window, operand 0, single buffered']
    %8 = vsyncpa [#allocation3], 0
    %9 = vsyncpa [#allocation4], 0
    // Predicated region
    $region2: #{pallas_layernorm.1} parent=1 // pred_check
      _
    $region3: #{pallas_layernorm.1} parent=1 // pred_check_branch
      %11 = sbr.rel (0) target = $region5
    $region4: #{pallas_layernorm.1} parent=1 // pred_region
      %s13 = ssub.s32 3072, 3072
      %14 = vsyncadd [#allocation3], %s13
      %s15 = sshll.u32 [#allocation2], 4
      %s16 = int_to_ptr.vmem [resolvable:$true] %s15
      %21 = dma.hbm_to_vmem [thread:$0]  %s0, 3072, %s16, [#allocation3], 768, 768, 48
    $region5: #{pallas_layernorm.1} parent=1 // pred_fallthru
      _
    // Predicated region
    $region6: #{pallas_layernorm.1} parent=1 // pred_check
      _
    $region7: #{pallas_layernorm.1} parent=1 // pred_check_branch
      %23 = sbr.rel (0) target = $region9
    $region8: #{pallas_layernorm.1} parent=1 // pred_region
      _
    $region9: #{pallas_layernorm.1} parent=1 // pred_fallthru
      _
    // Predicated region
    $region10: #{pallas_layernorm.1} parent=1 // pred_check
      _
    $region11: #{pallas_layernorm.1} parent=1 // pred_check_branch
      %25 = sbr.rel (0) target = $region13
    $region12: #{pallas_layernorm.1} parent=1 // pred_region
      _
    $region13: #{pallas_layernorm.1} parent=1 // pred_fallthru
      _
    // Predicated region
    $region14: #{pallas_layernorm.1} parent=1 // pred_check
      _
    $region15: #{pallas_layernorm.1} parent=1 // pred_check_branch
      %27 = sbr.rel (0) target = $region17
    $region16: #{pallas_layernorm.1} parent=1 // pred_region
      %28 = dma.done [#allocation3], 3072
    $region17: #{pallas_layernorm.1} parent=1 // pred_fallthru
      _
    %v29 = vld [vmem:[#allocation2] sm:$0xff]
    %v30 = vld [vmem:[#allocation2 + $0x8] sm:$0xff]
    %v31 = vld [vmem:[#allocation2 + $0x10] sm:$0xff]
    %v32 = vld [vmem:[#allocation2 + $0x18] sm:$0xff]
    %v33 = vld [vmem:[#allocation2 + $0x20] sm:$0xff]
    %v34 = vld [vmem:[#allocation2 + $0x28] sm:$0xff]
    %v35 = vld [vmem:[#allocation2 + $0x30] sm:$0xff]
    %v36 = vld [vmem:[#allocation2 + $0x38] sm:$0xff]
    %v37 = vld [vmem:[#allocation2 + $0x40] sm:$0xff]
    %v38 = vld [vmem:[#allocation2 + $0x48] sm:$0xff]
    %v39 = vld [vmem:[#allocation2 + $0x50] sm:$0xff]
    %v40 = vld [vmem:[#allocation2 + $0x58] sm:$0xff]
    %v41 = vld [vmem:[#allocation2 + $0x60] sm:$0xff]
    %v42 = vld [vmem:[#allocation2 + $0x68] sm:$0xff]
    %v43 = vld [vmem:[#allocation2 + $0x70] sm:$0xff]
    %v44 = vld [vmem:[#allocation2 + $0x78] sm:$0xff]
    %v45 = vld [vmem:[#allocation2 + $0x80] sm:$0xff]
    %v46 = vld [vmem:[#allocation2 + $0x88] sm:$0xff]
    %v47 = vld [vmem:[#allocation2 + $0x90] sm:$0xff]
    %v48 = vld [vmem:[#allocation2 + $0x98] sm:$0xff]
    %v49 = vld [vmem:[#allocation2 + $0xa0] sm:$0xff]
    %v50 = vld [vmem:[#allocation2 + $0xa8] sm:$0xff]
    %v51 = vld [vmem:[#allocation2 + $0xb0] sm:$0xff]
    %v52 = vld [vmem:[#allocation2 + $0xb8] sm:$0xff]
    %v53 = vadd.f32 %v29, %v30
    %v54 = vadd.f32 %v53, %v31
    %v55 = vadd.f32 %v54, %v32
    %v56 = vadd.f32 %v55, %v33
    %v57 = vadd.f32 %v56, %v34
    %58 = vadd.xlane.f32.xlu0 %v57
    %v59 = vpop.xlane.xlu0 %58
    %v60 = vadd.f32 %v35, %v36
    %v61 = vadd.f32 %v60, %v37
    %v62 = vadd.f32 %v61, %v38
    %v63 = vadd.f32 %v62, %v39
    %v64 = vadd.f32 %v63, %v40
    %65 = vadd.xlane.f32.xlu0 %v64
    %v66 = vpop.xlane.xlu0 %65
    %v67 = vadd.f32 %v41, %v42
    %v68 = vadd.f32 %v67, %v43
    %v69 = vadd.f32 %v68, %v44
    %v70 = vadd.f32 %v69, %v45
    %v71 = vadd.f32 %v70, %v46
    %72 = vadd.xlane.f32.xlu0 %v71
    %v73 = vpop.xlane.xlu0 %72
    %v74 = vadd.f32 %v47, %v48
    %v75 = vadd.f32 %v74, %v49
    %v76 = vadd.f32 %v75, %v50
    %v77 = vadd.f32 %v76, %v51
    %v78 = vadd.f32 %v77, %v52
    %79 = vadd.xlane.f32.xlu0 %v78
    %v80 = vpop.xlane.xlu0 %79
    %v81 = vrcp.pop 768.0
    %v82 = vmul.f32 %v59, %v81
    %v83 = vmul.f32 %v66, %v81
    %v84 = vmul.f32 %v73, %v81
    %v85 = vmul.f32 %v80, %v81
    %v86 = vsub.f32 %v29, %v82
    %v87 = vsub.f32 %v30, %v82
    %v88 = vsub.f32 %v31, %v82
    %v89 = vsub.f32 %v32, %v82
    %v90 = vsub.f32 %v33, %v82
    %v91 = vsub.f32 %v34, %v82
    %v92 = vsub.f32 %v35, %v83
    %v93 = vsub.f32 %v36, %v83
    %v94 = vsub.f32 %v37, %v83
    %v95 = vsub.f32 %v38, %v83
    %v96 = vsub.f32 %v39, %v83
    %v97 = vsub.f32 %v40, %v83
    %v98 = vsub.f32 %v41, %v84
    %v99 = vsub.f32 %v42, %v84
    %v100 = vsub.f32 %v43, %v84
    %v101 = vsub.f32 %v44, %v84
    %v102 = vsub.f32 %v45, %v84
    %v103 = vsub.f32 %v46, %v84
    %v104 = vsub.f32 %v47, %v85
    %v105 = vsub.f32 %v48, %v85
    %v106 = vsub.f32 %v49, %v85
    %v107 = vsub.f32 %v50, %v85
    %v108 = vsub.f32 %v51, %v85
    %v109 = vsub.f32 %v52, %v85
    %v110 = vmul.f32 %v86, %v86
    %v111 = vmul.f32 %v87, %v87
    %v112 = vmul.f32 %v88, %v88
    %v113 = vmul.f32 %v89, %v89
    %v114 = vmul.f32 %v90, %v90
    %v115 = vmul.f32 %v91, %v91
    %v116 = vmul.f32 %v92, %v92
    %v117 = vmul.f32 %v93, %v93
    %v118 = vmul.f32 %v94, %v94
    %v119 = vmul.f32 %v95, %v95
    %v120 = vmul.f32 %v96, %v96
    %v121 = vmul.f32 %v97, %v97
    %v122 = vmul.f32 %v98, %v98
    %v123 = vmul.f32 %v99, %v99
    %v124 = vmul.f32 %v100, %v100
    %v125 = vmul.f32 %v101, %v101
    %v126 = vmul.f32 %v102, %v102
    %v127 = vmul.f32 %v103, %v103
    %v128 = vmul.f32 %v104, %v104
    %v129 = vmul.f32 %v105, %v105
    %v130 = vmul.f32 %v106, %v106
    %v131 = vmul.f32 %v107, %v107
    %v132 = vmul.f32 %v108, %v108
    %v133 = vmul.f32 %v109, %v109
    %v134 = vadd.f32 %v110, %v111
    %v135 = vadd.f32 %v134, %v112
    %v136 = vadd.f32 %v135, %v113
    %v137 = vadd.f32 %v136, %v114
    %v138 = vadd.f32 %v137, %v115
    %139 = vadd.xlane.f32.xlu0 %v138
    %v140 = vpop.xlane.xlu0 %139
    %v141 = vadd.f32 %v116, %v117
    %v142 = vadd.f32 %v141, %v118
    %v143 = vadd.f32 %v142, %v119
    %v144 = vadd.f32 %v143, %v120
    %v145 = vadd.f32 %v144, %v121
    %146 = vadd.xlane.f32.xlu0 %v145
    %v147 = vpop.xlane.xlu0 %146
    %v148 = vadd.f32 %v122, %v123
    %v149 = vadd.f32 %v148, %v124
    %v150 = vadd.f32 %v149, %v125
    %v151 = vadd.f32 %v150, %v126
    %v152 = vadd.f32 %v151, %v127
    %153 = vadd.xlane.f32.xlu0 %v152
    %v154 = vpop.xlane.xlu0 %153
    %v155 = vadd.f32 %v128, %v129
    %v156 = vadd.f32 %v155, %v130
    %v157 = vadd.f32 %v156, %v131
    %v158 = vadd.f32 %v157, %v132
    %v159 = vadd.f32 %v158, %v133
    %160 = vadd.xlane.f32.xlu0 %v159
    %v161 = vpop.xlane.xlu0 %160
    %v162 = vmul.f32 %v140, %v81
    %v163 = vmul.f32 %v147, %v81
    %v164 = vmul.f32 %v154, %v81
    %v165 = vmul.f32 %v161, %v81
    %v166 = vadd.f32 %v162, 1e-06
    %v167 = vadd.f32 %v163, 1e-06
    %v168 = vadd.f32 %v164, 1e-06
    %v169 = vadd.f32 %v165, 1e-06
    %v170 = vrsqrt.pop %v166
    %v171 = vrsqrt.pop %v167
    %v172 = vrsqrt.pop %v168
    %v173 = vrsqrt.pop %v169
    %v174 = vmul.f32 %v86, %v170
    %v175 = vmul.f32 %v87, %v170
    %v176 = vmul.f32 %v88, %v170
    %v177 = vmul.f32 %v89, %v170
    %v178 = vmul.f32 %v90, %v170
    %v179 = vmul.f32 %v91, %v170
    %v180 = vmul.f32 %v92, %v171
    %v181 = vmul.f32 %v93, %v171
    %v182 = vmul.f32 %v94, %v171
    %v183 = vmul.f32 %v95, %v171
    %v184 = vmul.f32 %v96, %v171
    %v185 = vmul.f32 %v97, %v171
    %v186 = vmul.f32 %v98, %v172
    %v187 = vmul.f32 %v99, %v172
    %v188 = vmul.f32 %v100, %v172
    %v189 = vmul.f32 %v101, %v172
    %v190 = vmul.f32 %v102, %v172
    %v191 = vmul.f32 %v103, %v172
    %v192 = vmul.f32 %v104, %v173
    %v193 = vmul.f32 %v105, %v173
    %v194 = vmul.f32 %v106, %v173
    %v195 = vmul.f32 %v107, %v173
    %v196 = vmul.f32 %v108, %v173
    %v197 = vmul.f32 %v109, %v173
    %v198 = vld [vmem:[%s1] sm:$0x3f]
    %v200 = vlaneseq
    %v201 = vshrl.u32 %v200, 7
    %v202 = vsub.s32 0, %v201
    %v203 = vrot.slane %v198, %v202
    %v204 = vlaneseq
    %v205 = vshrl.u32 %v204, 7
    %v206 = vsub.s32 1, %v205
    %v207 = vrot.slane %v198, %v206
    %v208 = vlaneseq
    %v209 = vshrl.u32 %v208, 7
    %v210 = vsub.s32 2, %v209
    %v211 = vrot.slane %v198, %v210
    %v212 = vlaneseq
    %v213 = vshrl.u32 %v212, 7
    %v214 = vsub.s32 3, %v213
    %v215 = vrot.slane %v198, %v214
    %v216 = vlaneseq
    %v217 = vshrl.u32 %v216, 7
    %v218 = vsub.s32 4, %v217
    %v219 = vrot.slane %v198, %v218
    %v220 = vlaneseq
    %v221 = vshrl.u32 %v220, 7
    %v222 = vsub.s32 5, %v221
    %v223 = vrot.slane %v198, %v222
    %v230 = vmul.f32 %v174, %v203
    %v231 = vmul.f32 %v175, %v207
    %v232 = vmul.f32 %v176, %v211
    %v233 = vmul.f32 %v177, %v215
    %v234 = vmul.f32 %v178, %v219
    %v235 = vmul.f32 %v179, %v223
    %v236 = vmul.f32 %v180, %v203
    %v237 = vmul.f32 %v181, %v207
    %v238 = vmul.f32 %v182, %v211
    %v239 = vmul.f32 %v183, %v215
    %v240 = vmul.f32 %v184, %v219
    %v241 = vmul.f32 %v185, %v223
    %v242 = vmul.f32 %v186, %v203
    %v243 = vmul.f32 %v187, %v207
    %v244 = vmul.f32 %v188, %v211
    %v245 = vmul.f32 %v189, %v215
    %v246 = vmul.f32 %v190, %v219
    %v247 = vmul.f32 %v191, %v223
    %v248 = vmul.f32 %v192, %v203
    %v249 = vmul.f32 %v193, %v207
    %v250 = vmul.f32 %v194, %v211
    %v251 = vmul.f32 %v195, %v215
    %v252 = vmul.f32 %v196, %v219
    %v253 = vmul.f32 %v197, %v223
    %v254 = vld [vmem:[%s2] sm:$0x3f]
    %v256 = vlaneseq
    %v257 = vshrl.u32 %v256, 7
    %v258 = vsub.s32 0, %v257
    %v259 = vrot.slane %v254, %v258
    %v260 = vlaneseq
    %v261 = vshrl.u32 %v260, 7
    %v262 = vsub.s32 1, %v261
    %v263 = vrot.slane %v254, %v262
    %v264 = vlaneseq
    %v265 = vshrl.u32 %v264, 7
    %v266 = vsub.s32 2, %v265
    %v267 = vrot.slane %v254, %v266
    %v268 = vlaneseq
    %v269 = vshrl.u32 %v268, 7
    %v270 = vsub.s32 3, %v269
    %v271 = vrot.slane %v254, %v270
    %v272 = vlaneseq
    %v273 = vshrl.u32 %v272, 7
    %v274 = vsub.s32 4, %v273
    %v275 = vrot.slane %v254, %v274
    %v276 = vlaneseq
    %v277 = vshrl.u32 %v276, 7
    %v278 = vsub.s32 5, %v277
    %v279 = vrot.slane %v254, %v278
    %v286 = vadd.f32 %v230, %v259
    %v287 = vadd.f32 %v231, %v263
    %v288 = vadd.f32 %v232, %v267
    %v289 = vadd.f32 %v233, %v271
    %v290 = vadd.f32 %v234, %v275
    %v291 = vadd.f32 %v235, %v279
    %v292 = vadd.f32 %v236, %v259
    %v293 = vadd.f32 %v237, %v263
    %v294 = vadd.f32 %v238, %v267
    %v295 = vadd.f32 %v239, %v271
    %v296 = vadd.f32 %v240, %v275
    %v297 = vadd.f32 %v241, %v279
    %v298 = vadd.f32 %v242, %v259
    %v299 = vadd.f32 %v243, %v263
    %v300 = vadd.f32 %v244, %v267
    %v301 = vadd.f32 %v245, %v271
    %v302 = vadd.f32 %v246, %v275
    %v303 = vadd.f32 %v247, %v279
    %v304 = vadd.f32 %v248, %v259
    %v305 = vadd.f32 %v249, %v263
    %v306 = vadd.f32 %v250, %v267
    %v307 = vadd.f32 %v251, %v271
    %v308 = vadd.f32 %v252, %v275
    %v309 = vadd.f32 %v253, %v279
    %310 = vst [vmem:[#allocation5] sm:$0xff] %v286
    %311 = vst [vmem:[#allocation5 + $0x8] sm:$0xff] %v287
    %312 = vst [vmem:[#allocation5 + $0x10] sm:$0xff] %v288
    %313 = vst [vmem:[#allocation5 + $0x18] sm:$0xff] %v289
    %314 = vst [vmem:[#allocation5 + $0x20] sm:$0xff] %v290
    %315 = vst [vmem:[#allocation5 + $0x28] sm:$0xff] %v291
    %316 = vst [vmem:[#allocation5 + $0x30] sm:$0xff] %v292
    %317 = vst [vmem:[#allocation5 + $0x38] sm:$0xff] %v293
    %318 = vst [vmem:[#allocation5 + $0x40] sm:$0xff] %v294
    %319 = vst [vmem:[#allocation5 + $0x48] sm:$0xff] %v295
    %320 = vst [vmem:[#allocation5 + $0x50] sm:$0xff] %v296
    %321 = vst [vmem:[#allocation5 + $0x58] sm:$0xff] %v297
    %322 = vst [vmem:[#allocation5 + $0x60] sm:$0xff] %v298
    %323 = vst [vmem:[#allocation5 + $0x68] sm:$0xff] %v299
    %324 = vst [vmem:[#allocation5 + $0x70] sm:$0xff] %v300
    %325 = vst [vmem:[#allocation5 + $0x78] sm:$0xff] %v301
    %326 = vst [vmem:[#allocation5 + $0x80] sm:$0xff] %v302
    %327 = vst [vmem:[#allocation5 + $0x88] sm:$0xff] %v303
    %328 = vst [vmem:[#allocation5 + $0x90] sm:$0xff] %v304
    %329 = vst [vmem:[#allocation5 + $0x98] sm:$0xff] %v305
    %330 = vst [vmem:[#allocation5 + $0xa0] sm:$0xff] %v306
    %331 = vst [vmem:[#allocation5 + $0xa8] sm:$0xff] %v307
    %332 = vst [vmem:[#allocation5 + $0xb0] sm:$0xff] %v308
    %333 = vst [vmem:[#allocation5 + $0xb8] sm:$0xff] %v309
    // Predicated region
    $region18: #{pallas_layernorm.1} parent=1 // pred_check
      _
    $region19: #{pallas_layernorm.1} parent=1 // pred_check_branch
      %335 = sbr.rel (0) target = $region21
    $region20: #{pallas_layernorm.1} parent=1 // pred_region
      %s337 = ssub.s32 3072, 3072
      %338 = vsyncadd [#allocation4], %s337
      %s339 = sshll.u32 [#allocation5], 4
      %s340 = int_to_ptr.vmem [resolvable:$true] %s339
      %345 = dma.vmem_to_hbm [thread:$0]  %s340, 3072, %s3, [#allocation4], 768, 768, 48
    $region21: #{pallas_layernorm.1} parent=1 // pred_fallthru
      _
    // Predicated region
    $region22: #{pallas_layernorm.1} parent=1 // pred_check
      _
    $region23: #{pallas_layernorm.1} parent=1 // pred_check_branch
      %347 = sbr.rel (0) target = $region25
    $region24: #{pallas_layernorm.1} parent=1 // pred_region
      %348 = dma.done [#allocation4], 3072
    $region25: #{pallas_layernorm.1} parent=1 // pred_fallthru
      _
    %349 = vsyncpa [#allocation3], 1
    %350 = vsyncpa [#allocation4], 1

</llo_original>
